<compile_context>
chip_gen: v7x
topology: tpu7x:2x2x1
jax: 0.10.0
libtpu: 0.0.40
codegen_flags: <defaults>
</compile_context>

<pallas_src>
import math
import functools

import jax
import jax.numpy as jnp
from jax.experimental import pallas as pl
from jax.experimental.pallas import tpu as pltpu

# ----------------------- config (small, consistent shapes) -------------------
BATCH = 2
SEQ = 8
HIDDEN = 32
NUM_HEADS = 4
HEAD_DIM = HIDDEN // NUM_HEADS          # 8
SVD_RANK = 16


def _self_attn_svd_kernel(
    x_ref,        # (1, S, H)   bf16 — one batch element per grid step
    wU_ref,       # (H, 3R)     bf16 fused U weights
    wV_ref,       # (3, R, H)   bf16 stacked V weights (Q branch pre-scaled)
    bV_ref,       # (3, 1, H)   f32  stacked biases (Q branch pre-scaled)
    mask_ref,     # (1, 1, S)   f32  additive attention mask for this batch
    out_ref,      # (1, S, H)
    *,
    num_heads: int,
    head_dim: int,
    svd_rank: int,
):
    S = x_ref.shape[1]
    R = svd_rank

    x = x_ref[0]                                                     # (S, H) bf16

    # --- fused U projection: one dense MXU pass, f32 accumulation ------------
    u = jnp.dot(x, wU_ref[...], preferred_element_type=jnp.float32)  # (S, 3R)
    u = u.astype(jnp.bfloat16)

    # --- three dense (S,R)@(R,H) V projections (no block-diag zero padding) --
    def v_proj(idx):
        acc = jnp.dot(u[:, idx * R:(idx + 1) * R], wV_ref[idx],
                      preferred_element_type=jnp.float32)            # (S, H) f32
        return (acc + bV_ref[idx]).astype(jnp.bfloat16)              # bias f32, then bf16

    q = v_proj(0)     # already scaled by 1/sqrt(head_dim) via host-side folding
    k = v_proj(1)
    v = v_proj(2)

    # --- head-major (nH, S, d) tensors ---------------------------------------
    # One relayout's worth of data movement per tensor is inherent to going from
    # lane-contiguous heads to a head-batched contraction; done once per tensor.
    def heads(t):  # (S, H) -> (nH, S, d)
        return jnp.concatenate(
            [t[None, :, h * head_dim:(h + 1) * head_dim] for h in range(num_heads)],
            axis=0)

    qh = heads(q)
    kh = heads(k)
    vh = heads(v)

    # --- scores + mask (scale already folded into Q) --------------------------
    scores = jnp.einsum("hqd,hkd->hqk", qh, kh,
                        preferred_element_type=jnp.float32)          # (nH, S, S) f32
    scores = scores + mask_ref[...]                                  # (1,1,S) broadcast

    # --- softmax (f32 stats, EUP reciprocal) ----------------------------------
    m = jnp.max(scores, axis=-1, keepdims=True)
    e = jnp.exp(scores - m)
    denom = jnp.sum(e, axis=-1, keepdims=True)
    probs = e * pl.reciprocal(denom, approx=True)
    # TODO(synk): attention-probs dropout omitted (eval-mode identity); head_mask is None.

    # --- probs @ V (bf16 operands, f32 accumulation) --------------------------
    ctx = jnp.einsum("hqk,hkd->hqd", probs.astype(jnp.bfloat16), vh,
                     preferred_element_type=jnp.float32)             # (nH, S, d)

    # --- re-assemble heads along the lane axis; one full-width (S,H) store ----
    out = jnp.concatenate([ctx[h] for h in range(num_heads)], axis=-1)  # (S, H)
    out_ref[0] = out.astype(out_ref.dtype)


def _prepare_params(params, head_dim):
    """Host-side prep: fused bf16 U weights, stacked bf16 V weights with the
    1/sqrt(d) attention scale folded into the Q branch, stacked f32 biases."""
    inv_sqrt_d = 1.0 / math.sqrt(head_dim)
    wU = jnp.concatenate([params["wqu_t"], params["wku_t"], params["wvu_t"]],
                         axis=1).astype(jnp.bfloat16)                # (H, 3R)
    wV = jnp.stack([params["wqv_t"] * inv_sqrt_d,
                    params["wkv_t"],
                    params["wvv_t"]], axis=0).astype(jnp.bfloat16)   # (3, R, H)
    bV = jnp.stack([params["bq_v"] * inv_sqrt_d,
                    params["bk_v"],
                    params["bv_v"]], axis=0).astype(jnp.float32)     # (3, 1, H)
    return wU, wV, bV


def bert_self_attention_svd(hidden_states, attention_mask, params):
    """hidden_states: [B, S, H] fp32; attention_mask: [B, 1, 1, S] additive fp32."""
    B, S, H = hidden_states.shape
    R = params["wqu_t"].shape[1]
    d = H // NUM_HEADS

    wU, wV, bV = _prepare_params(params, d)
    x_bf16 = hidden_states.astype(jnp.bfloat16)          # halves activation DMA bytes
    mask = attention_mask.reshape(B, 1, S).astype(jnp.float32)

    kernel = functools.partial(
        _self_attn_svd_kernel, num_heads=NUM_HEADS, head_dim=d, svd_rank=R)

    grid_spec = pltpu.PrefetchScalarGridSpec(
        num_scalar_prefetch=0,
        grid=(B,),                       # one batch element per step, pipelined
        in_specs=[
            pl.BlockSpec((1, S, H), lambda b: (b, 0, 0)),     # x block per batch
            pl.BlockSpec((H, 3 * R), lambda b: (0, 0)),       # wU resident
            pl.BlockSpec((3, R, H), lambda b: (0, 0, 0)),     # wV resident
            pl.BlockSpec((3, 1, H), lambda b: (0, 0, 0)),     # bV resident
            pl.BlockSpec((1, 1, S), lambda b: (b, 0, 0)),     # mask block per batch
        ],
        out_specs=pl.BlockSpec((1, S, H), lambda b: (b, 0, 0)),
    )

    return pl.pallas_call(
        kernel,
        out_shape=jax.ShapeDtypeStruct((B, S, H), hidden_states.dtype),
        grid_spec=grid_spec,
        compiler_params=pltpu.CompilerParams(
            dimension_semantics=("parallel",),     # batch steps independent; 2 TCs on v7x
            vmem_limit_bytes=32 * 1024 * 1024,     # above the 16 MiB v5e scoped default
        ),
    )(x_bf16, wU, wV, bV, mask)


def _reference(hidden_states, attention_mask, params):
    """Pure-JAX (f32) reproduction of the PyTorch forward, for sanity checking."""
    B, S, H = hidden_states.shape

    def proj(wu_t, wv_t, b):
        return hidden_states @ wu_t @ wv_t + b

    q = proj(params["wqu_t"], params["wqv_t"], params["bq_v"][0])
    k = proj(params["wku_t"], params["wkv_t"], params["bk_v"][0])
    v = proj(params["wvu_t"], params["wvv_t"], params["bv_v"][0])

    def split(x):  # [B, S, H] -> [B, nH, S, d]
        return x.reshape(B, S, NUM_HEADS, HEAD_DIM).transpose(0, 2, 1, 3)

    qh, kh, vh = split(q), split(k), split(v)
    scores = jnp.einsum("bhqd,bhkd->bhqk", qh, kh) / math.sqrt(HEAD_DIM)
    scores = scores + attention_mask                     # [B,1,1,S] broadcasts
    probs = jax.nn.softmax(scores, axis=-1)
    ctx = jnp.einsum("bhqk,bhkd->bhqd", probs, vh)
    return ctx.transpose(0, 2, 1, 3).reshape(B, S, H)


def _init_params(key):
    ks = jax.random.split(key, 9)
    scale = 0.02
    return {
        # nn.Linear(in,out) weight is (out,in); store transposed (in,out).
        "wqu_t": scale * jax.random.normal(ks[0], (HIDDEN, SVD_RANK), jnp.float32),
        "wqv_t": scale * jax.random.normal(ks[1], (SVD_RANK, HIDDEN), jnp.float32),
        "bq_v":  scale * jax.random.normal(ks[2], (1, HIDDEN), jnp.float32),
        "wku_t": scale * jax.random.normal(ks[3], (HIDDEN, SVD_RANK), jnp.float32),
        "wkv_t": scale * jax.random.normal(ks[4], (SVD_RANK, HIDDEN), jnp.float32),
        "bk_v":  scale * jax.random.normal(ks[5], (1, HIDDEN), jnp.float32),
        "wvu_t": scale * jax.random.normal(ks[6], (HIDDEN, SVD_RANK), jnp.float32),
        "wvv_t": scale * jax.random.normal(ks[7], (SVD_RANK, HIDDEN), jnp.float32),
        "bv_v":  scale * jax.random.normal(ks[8], (1, HIDDEN), jnp.float32),
    }


if __name__ == "__main__":
    key = jax.random.PRNGKey(0)
    k_x, k_p, _ = jax.random.split(key, 3)

    hidden_states = jax.random.normal(k_x, (BATCH, SEQ, HIDDEN), jnp.float32)
    params = _init_params(k_p)

    # Additive mask: last two key positions of batch 1 are masked out.
    mask = jnp.zeros((BATCH, 1, 1, SEQ), jnp.float32)
    mask = mask.at[1, 0, 0, -2:].set(-10000.0)

    out = bert_self_attention_svd(hidden_states, mask, params)
    out = jax.block_until_ready(out)

    ref = _reference(hidden_states, mask, params)
    assert out.shape == (BATCH, SEQ, HIDDEN)
    # Tolerance covers bf16 MXU operands + approximate EUP reciprocal in softmax.
    assert jnp.allclose(out, ref, atol=3e-3, rtol=3e-3), "mismatch vs JAX reference"

    print("KERNEL_OK")
</pallas_src>

<mosaic_0001>
module attributes {stable_mosaic.version = 11 : i64} {
  func.func @_self_attn_svd_kernel(%arg0: i32, %arg1: memref<1x8x32xbf16, #tpu.memory_space<vmem>>, %arg2: memref<32x48xbf16, #tpu.memory_space<vmem>>, %arg3: memref<3x16x32xbf16, #tpu.memory_space<vmem>>, %arg4: memref<3x1x32xf32, #tpu.memory_space<vmem>>, %arg5: memref<1x1x8xf32, #tpu.memory_space<vmem>>, %arg6: memref<1x8x32xf32, #tpu.memory_space<vmem>>) attributes {dimension_semantics = [#tpu.dimension_semantics<parallel>], iteration_bounds = array<i64: 2>, scalar_prefetch = 0 : i64, scratch_operands = 0 : i64, tpu.core_type = #tpu.core_type<tc>, window_params = [{transform_indices = @transform_0, window_bounds = array<i64: 1, 8, 32>}, {pipeline_mode = #tpu.pipeline_mode<synchronous>, transform_indices = @transform_1, window_bounds = array<i64: 32, 48>}, {pipeline_mode = #tpu.pipeline_mode<synchronous>, transform_indices = @transform_2, window_bounds = array<i64: 3, 16, 32>}, {pipeline_mode = #tpu.pipeline_mode<synchronous>, transform_indices = @transform_3, window_bounds = array<i64: 3, 1, 32>}, {transform_indices = @transform_4, window_bounds = array<i64: 1, 1, 8>}, {transform_indices = @transform_5, window_bounds = array<i64: 1, 8, 32>}]} {
    %c0 = arith.constant 0 : index
    %c0_0 = arith.constant 0 : index
    %c0_1 = arith.constant 0 : index
    %0 = vector.load %arg1[%c0, %c0_0, %c0_1] : memref<1x8x32xbf16, #tpu.memory_space<vmem>>, vector<1x8x32xbf16>
    %1 = vector.shape_cast %0 : vector<1x8x32xbf16> to vector<8x32xbf16>
    %c0_2 = arith.constant 0 : index
    %c0_3 = arith.constant 0 : index
    %2 = vector.load %arg2[%c0_2, %c0_3] : memref<32x48xbf16, #tpu.memory_space<vmem>>, vector<32x48xbf16>
    %cst = arith.constant dense<0.000000e+00> : vector<8x48xf32>
    %3 = tpu.matmul %1, %2, %cst {dimension_numbers = #tpu.dot_dimension_numbers<[1], [0], [0], [1], [0, 0, 1, 1], [], []>} : vector<8x32xbf16>, vector<32x48xbf16>, vector<8x48xf32> -> vector<8x48xf32>
    %4 = arith.truncf %3 : vector<8x48xf32> to vector<8x48xbf16>
    %5 = vector.extract_strided_slice %4 {offsets = [0, 0], sizes = [8, 16], strides = [1, 1]} : vector<8x48xbf16> to vector<8x16xbf16>
    %c0_4 = arith.constant 0 : index
    %c0_5 = arith.constant 0 : index
    %c0_6 = arith.constant 0 : index
    %6 = vector.load %arg3[%c0_4, %c0_5, %c0_6] : memref<3x16x32xbf16, #tpu.memory_space<vmem>>, vector<1x16x32xbf16>
    %7 = vector.shape_cast %6 : vector<1x16x32xbf16> to vector<16x32xbf16>
    %cst_7 = arith.constant dense<0.000000e+00> : vector<8x32xf32>
    %8 = tpu.matmul %5, %7, %cst_7 {dimension_numbers = #tpu.dot_dimension_numbers<[1], [0], [0], [1], [0, 0, 1, 1], [], []>} : vector<8x16xbf16>, vector<16x32xbf16>, vector<8x32xf32> -> vector<8x32xf32>
    %c0_8 = arith.constant 0 : index
    %c0_9 = arith.constant 0 : index
    %c0_10 = arith.constant 0 : index
    %9 = vector.load %arg4[%c0_8, %c0_9, %c0_10] : memref<3x1x32xf32, #tpu.memory_space<vmem>>, vector<1x1x32xf32>
    %10 = vector.shape_cast %9 : vector<1x1x32xf32> to vector<1x32xf32>
    %11 = vector.broadcast %10 : vector<1x32xf32> to vector<8x32xf32>
    %12 = arith.addf %8, %11 : vector<8x32xf32>
    %13 = arith.truncf %12 : vector<8x32xf32> to vector<8x32xbf16>
    %14 = vector.extract_strided_slice %4 {offsets = [0, 16], sizes = [8, 16], strides = [1, 1]} : vector<8x48xbf16> to vector<8x16xbf16>
    %c1 = arith.constant 1 : index
    %c0_11 = arith.constant 0 : index
    %c0_12 = arith.constant 0 : index
    %15 = vector.load %arg3[%c1, %c0_11, %c0_12] : memref<3x16x32xbf16, #tpu.memory_space<vmem>>, vector<1x16x32xbf16>
    %16 = vector.shape_cast %15 : vector<1x16x32xbf16> to vector<16x32xbf16>
    %cst_13 = arith.constant dense<0.000000e+00> : vector<8x32xf32>
    %17 = tpu.matmul %14, %16, %cst_13 {dimension_numbers = #tpu.dot_dimension_numbers<[1], [0], [0], [1], [0, 0, 1, 1], [], []>} : vector<8x16xbf16>, vector<16x32xbf16>, vector<8x32xf32> -> vector<8x32xf32>
    %c1_14 = arith.constant 1 : index
    %c0_15 = arith.constant 0 : index
    %c0_16 = arith.constant 0 : index
    %18 = vector.load %arg4[%c1_14, %c0_15, %c0_16] : memref<3x1x32xf32, #tpu.memory_space<vmem>>, vector<1x1x32xf32>
    %19 = vector.shape_cast %18 : vector<1x1x32xf32> to vector<1x32xf32>
    %20 = vector.broadcast %19 : vector<1x32xf32> to vector<8x32xf32>
    %21 = arith.addf %17, %20 : vector<8x32xf32>
    %22 = arith.truncf %21 : vector<8x32xf32> to vector<8x32xbf16>
    %23 = vector.extract_strided_slice %4 {offsets = [0, 32], sizes = [8, 16], strides = [1, 1]} : vector<8x48xbf16> to vector<8x16xbf16>
    %c2 = arith.constant 2 : index
    %c0_17 = arith.constant 0 : index
    %c0_18 = arith.constant 0 : index
    %24 = vector.load %arg3[%c2, %c0_17, %c0_18] : memref<3x16x32xbf16, #tpu.memory_space<vmem>>, vector<1x16x32xbf16>
    %25 = vector.shape_cast %24 : vector<1x16x32xbf16> to vector<16x32xbf16>
    %cst_19 = arith.constant dense<0.000000e+00> : vector<8x32xf32>
    %26 = tpu.matmul %23, %25, %cst_19 {dimension_numbers = #tpu.dot_dimension_numbers<[1], [0], [0], [1], [0, 0, 1, 1], [], []>} : vector<8x16xbf16>, vector<16x32xbf16>, vector<8x32xf32> -> vector<8x32xf32>
    %c2_20 = arith.constant 2 : index
    %c0_21 = arith.constant 0 : index
    %c0_22 = arith.constant 0 : index
    %27 = vector.load %arg4[%c2_20, %c0_21, %c0_22] : memref<3x1x32xf32, #tpu.memory_space<vmem>>, vector<1x1x32xf32>
    %28 = vector.shape_cast %27 : vector<1x1x32xf32> to vector<1x32xf32>
    %29 = vector.broadcast %28 : vector<1x32xf32> to vector<8x32xf32>
    %30 = arith.addf %26, %29 : vector<8x32xf32>
    %31 = arith.truncf %30 : vector<8x32xf32> to vector<8x32xbf16>
    %32 = vector.extract_strided_slice %13 {offsets = [0, 0], sizes = [8, 8], strides = [1, 1]} : vector<8x32xbf16> to vector<8x8xbf16>
    %33 = vector.shape_cast %32 : vector<8x8xbf16> to vector<1x8x8xbf16>
    %34 = vector.extract_strided_slice %13 {offsets = [0, 8], sizes = [8, 8], strides = [1, 1]} : vector<8x32xbf16> to vector<8x8xbf16>
    %35 = vector.shape_cast %34 : vector<8x8xbf16> to vector<1x8x8xbf16>
    %36 = vector.extract_strided_slice %13 {offsets = [0, 16], sizes = [8, 8], strides = [1, 1]} : vector<8x32xbf16> to vector<8x8xbf16>
    %37 = vector.shape_cast %36 : vector<8x8xbf16> to vector<1x8x8xbf16>
    %38 = vector.extract_strided_slice %13 {offsets = [0, 24], sizes = [8, 8], strides = [1, 1]} : vector<8x32xbf16> to vector<8x8xbf16>
    %39 = vector.shape_cast %38 : vector<8x8xbf16> to vector<1x8x8xbf16>
    %40 = tpu.concatenate %33, %35, %37, %39 in 0 : vector<1x8x8xbf16>, vector<1x8x8xbf16>, vector<1x8x8xbf16>, vector<1x8x8xbf16> -> vector<4x8x8xbf16>
    %41 = vector.extract_strided_slice %22 {offsets = [0, 0], sizes = [8, 8], strides = [1, 1]} : vector<8x32xbf16> to vector<8x8xbf16>
    %42 = vector.shape_cast %41 : vector<8x8xbf16> to vector<1x8x8xbf16>
    %43 = vector.extract_strided_slice %22 {offsets = [0, 8], sizes = [8, 8], strides = [1, 1]} : vector<8x32xbf16> to vector<8x8xbf16>
    %44 = vector.shape_cast %43 : vector<8x8xbf16> to vector<1x8x8xbf16>
    %45 = vector.extract_strided_slice %22 {offsets = [0, 16], sizes = [8, 8], strides = [1, 1]} : vector<8x32xbf16> to vector<8x8xbf16>
    %46 = vector.shape_cast %45 : vector<8x8xbf16> to vector<1x8x8xbf16>
    %47 = vector.extract_strided_slice %22 {offsets = [0, 24], sizes = [8, 8], strides = [1, 1]} : vector<8x32xbf16> to vector<8x8xbf16>
    %48 = vector.shape_cast %47 : vector<8x8xbf16> to vector<1x8x8xbf16>
    %49 = tpu.concatenate %42, %44, %46, %48 in 0 : vector<1x8x8xbf16>, vector<1x8x8xbf16>, vector<1x8x8xbf16>, vector<1x8x8xbf16> -> vector<4x8x8xbf16>
    %50 = vector.extract_strided_slice %31 {offsets = [0, 0], sizes = [8, 8], strides = [1, 1]} : vector<8x32xbf16> to vector<8x8xbf16>
    %51 = vector.shape_cast %50 : vector<8x8xbf16> to vector<1x8x8xbf16>
    %52 = vector.extract_strided_slice %31 {offsets = [0, 8], sizes = [8, 8], strides = [1, 1]} : vector<8x32xbf16> to vector<8x8xbf16>
    %53 = vector.shape_cast %52 : vector<8x8xbf16> to vector<1x8x8xbf16>
    %54 = vector.extract_strided_slice %31 {offsets = [0, 16], sizes = [8, 8], strides = [1, 1]} : vector<8x32xbf16> to vector<8x8xbf16>
    %55 = vector.shape_cast %54 : vector<8x8xbf16> to vector<1x8x8xbf16>
    %56 = vector.extract_strided_slice %31 {offsets = [0, 24], sizes = [8, 8], strides = [1, 1]} : vector<8x32xbf16> to vector<8x8xbf16>
    %57 = vector.shape_cast %56 : vector<8x8xbf16> to vector<1x8x8xbf16>
    %58 = tpu.concatenate %51, %53, %55, %57 in 0 : vector<1x8x8xbf16>, vector<1x8x8xbf16>, vector<1x8x8xbf16>, vector<1x8x8xbf16> -> vector<4x8x8xbf16>
    "tpu.trace_start"() <{level = 10 : i32, message = "hqd,hkd->hqk"}> : () -> ()
    %cst_23 = arith.constant dense<0.000000e+00> : vector<4x8x8xf32>
    %59 = tpu.matmul %40, %49, %cst_23 {dimension_numbers = #tpu.dot_dimension_numbers<[2], [2], [1], [1], [0, 0, 0, 1, 1, 1], [0], [0]>} : vector<4x8x8xbf16>, vector<4x8x8xbf16>, vector<4x8x8xf32> -> vector<4x8x8xf32>
    "tpu.trace_stop"() : () -> ()
    %c0_24 = arith.constant 0 : index
    %c0_25 = arith.constant 0 : index
    %c0_26 = arith.constant 0 : index
    %60 = vector.load %arg5[%c0_24, %c0_25, %c0_26] : memref<1x1x8xf32, #tpu.memory_space<vmem>>, vector<1x1x8xf32>
    %61 = vector.broadcast %60 : vector<1x1x8xf32> to vector<4x8x8xf32>
    %62 = arith.addf %59, %61 : vector<4x8x8xf32>
    %cst_27 = arith.constant dense<0xFF800000> : vector<4x8xf32>
    %63 = vector.multi_reduction <maximumf>, %62, %cst_27 [2] : vector<4x8x8xf32> to vector<4x8xf32>
    %64 = vector.shape_cast %63 : vector<4x8xf32> to vector<4x8x1xf32>
    %65 = vector.broadcast %64 : vector<4x8x1xf32> to vector<4x8x8xf32>
    %66 = arith.subf %62, %65 : vector<4x8x8xf32>
    %67 = math.exp %66 : vector<4x8x8xf32>
    %cst_28 = arith.constant dense<0.000000e+00> : vector<4x8xf32>
    %68 = vector.multi_reduction <add>, %67, %cst_28 [2] : vector<4x8x8xf32> to vector<4x8xf32>
    %69 = vector.shape_cast %68 : vector<4x8xf32> to vector<4x8x1xf32>
    %70 = tpu.reciprocal %69 {approx = true} : vector<4x8x1xf32> -> vector<4x8x1xf32>
    %71 = vector.broadcast %70 : vector<4x8x1xf32> to vector<4x8x8xf32>
    %72 = arith.mulf %67, %71 : vector<4x8x8xf32>
    %73 = arith.truncf %72 : vector<4x8x8xf32> to vector<4x8x8xbf16>
    "tpu.trace_start"() <{level = 10 : i32, message = "hqk,hkd->hqd"}> : () -> ()
    %cst_29 = arith.constant dense<0.000000e+00> : vector<4x8x8xf32>
    %74 = tpu.matmul %73, %58, %cst_29 {dimension_numbers = #tpu.dot_dimension_numbers<[2], [1], [1], [2], [0, 0, 0, 1, 1, 2], [0], [0]>} : vector<4x8x8xbf16>, vector<4x8x8xbf16>, vector<4x8x8xf32> -> vector<4x8x8xf32>
    "tpu.trace_stop"() : () -> ()
    %75 = vector.extract_strided_slice %74 {offsets = [0, 0, 0], sizes = [1, 8, 8], strides = [1, 1, 1]} : vector<4x8x8xf32> to vector<1x8x8xf32>
    %76 = vector.shape_cast %75 : vector<1x8x8xf32> to vector<8x8xf32>
    %77 = vector.extract_strided_slice %74 {offsets = [1, 0, 0], sizes = [1, 8, 8], strides = [1, 1, 1]} : vector<4x8x8xf32> to vector<1x8x8xf32>
    %78 = vector.shape_cast %77 : vector<1x8x8xf32> to vector<8x8xf32>
    %79 = vector.extract_strided_slice %74 {offsets = [2, 0, 0], sizes = [1, 8, 8], strides = [1, 1, 1]} : vector<4x8x8xf32> to vector<1x8x8xf32>
    %80 = vector.shape_cast %79 : vector<1x8x8xf32> to vector<8x8xf32>
    %81 = vector.extract_strided_slice %74 {offsets = [3, 0, 0], sizes = [1, 8, 8], strides = [1, 1, 1]} : vector<4x8x8xf32> to vector<1x8x8xf32>
    %82 = vector.shape_cast %81 : vector<1x8x8xf32> to vector<8x8xf32>
    %83 = tpu.concatenate %76, %78, %80, %82 in 1 : vector<8x8xf32>, vector<8x8xf32>, vector<8x8xf32>, vector<8x8xf32> -> vector<8x32xf32>
    %c0_30 = arith.constant 0 : index
    %c0_31 = arith.constant 0 : index
    %c0_32 = arith.constant 0 : index
    %84 = vector.load %arg6[%c0_30, %c0_31, %c0_32] : memref<1x8x32xf32, #tpu.memory_space<vmem>>, vector<1x8x32xf32>
    %85 = vector.shape_cast %84 : vector<1x8x32xf32> to vector<8x32xf32>
    %86 = vector.shape_cast %83 : vector<8x32xf32> to vector<1x8x32xf32>
    tpu.vector_store %arg6[%c0_30, %c0_31, %c0_32], %86 {strides = array<i32>} : memref<1x8x32xf32, #tpu.memory_space<vmem>>, vector<1x8x32xf32>,
    return
  }
  func.func @transform_0(%arg0: i32) -> (i32, i32, i32) {
    %c0_i32 = arith.constant 0 : i32
    %c0_i32_0 = arith.constant 0 : i32
    %c0_i32_1 = arith.constant 0 : i32
    return %arg0, %c0_i32, %c0_i32_0 : i32, i32, i32
  }
  func.func @transform_1(%arg0: i32) -> (i32, i32) {
    %c0_i32 = arith.constant 0 : i32
    %c0_i32_0 = arith.constant 0 : i32
    %c0_i32_1 = arith.constant 0 : i32
    return %c0_i32, %c0_i32_0 : i32, i32
  }
  func.func @transform_2(%arg0: i32) -> (i32, i32, i32) {
    %c0_i32 = arith.constant 0 : i32
    %c0_i32_0 = arith.constant 0 : i32
    %c0_i32_1 = arith.constant 0 : i32
    %c0_i32_2 = arith.constant 0 : i32
    return %c0_i32, %c0_i32_0, %c0_i32_1 : i32, i32, i32
  }
  func.func @transform_3(%arg0: i32) -> (i32, i32, i32) {
    %c0_i32 = arith.constant 0 : i32
    %c0_i32_0 = arith.constant 0 : i32
    %c0_i32_1 = arith.constant 0 : i32
    %c0_i32_2 = arith.constant 0 : i32
    return %c0_i32, %c0_i32_0, %c0_i32_1 : i32, i32, i32
  }
  func.func @transform_4(%arg0: i32) -> (i32, i32, i32) {
    %c0_i32 = arith.constant 0 : i32
    %c0_i32_0 = arith.constant 0 : i32
    %c0_i32_1 = arith.constant 0 : i32
    return %arg0, %c0_i32, %c0_i32_0 : i32, i32, i32
  }
  func.func @transform_5(%arg0: i32) -> (i32, i32, i32) {
    %c0_i32 = arith.constant 0 : i32
    %c0_i32_0 = arith.constant 0 : i32
    %c0_i32_1 = arith.constant 0 : i32
    return %arg0, %c0_i32, %c0_i32_0 : i32, i32, i32
  }
}

</mosaic_0001>

<llo_original>
// kernel: tpu_custom_call.1
$region0: #{tpu_custom_call.1}
  #allocation0 [shape = 'u32[]', space=smem, size = 0x4, offset = 0x4, fixed_abs, tag = 'smem constant byte address 0x4 - core index']
  #allocation1 [shape = 'u32[144,128]{1,0:T(1,128)}', space=vmem, size = 0x12000, scoped, tag = 'internal scratch']
  %s0 = inlined_call_operand.hbm [shape: bf16[2,8,32], index: 0, kind: input, shape index: {}]
  %s1 = inlined_call_operand.hbm [shape: bf16[32,48], index: 1, kind: input, shape index: {}]
  %s2 = inlined_call_operand.hbm [shape: bf16[3,16,32], index: 2, kind: input, shape index: {}]
  %s3 = inlined_call_operand.vmem [shape: f32[3,1,32], index: 3, kind: input, shape index: {}]
  %s4 = inlined_call_operand.vmem [shape: f32[2,1,8], index: 4, kind: input, shape index: {}]
  %s5 = inlined_call_operand.hbm [shape: f32[2,8,32], index: 5, kind: output, shape index: {}]
  %s6 = sld [smem:[#allocation0]]
  $region65: #{tpu_custom_call.1} parent=0
    _
  %s8 = ssub.s32 1, %s6
  %s9 = scalar_select 0, %s8, %s6
  $region1: #{tpu_custom_call.1} parent=0
    #allocation2 [shape = 'u8[4096]{0}', space=vmem, size = 0x1000, scoped, tag = 'input window, operand 0']
    #allocation3 [shape = 's32[2]{0}', space=sflag, size = 0x8, scoped, tag = 'scoped memory for tpu_custom_call.1']
    #allocation4 [shape = 's32[2]{0}', space=sflag, size = 0x8, scoped, tag = 'scoped memory for tpu_custom_call.1']
    #allocation5 [shape = 'u8[8192]{0}', space=vmem, size = 0x2000, scoped, tag = 'input window, operand 1, single buffered']
    #allocation6 [shape = 's32[1]{0}', space=sflag, size = 0x4, scoped, tag = 'scoped memory for tpu_custom_call.1']
    #allocation7 [shape = 'u8[12288]{0}', space=vmem, size = 0x3000, scoped, tag = 'input window, operand 2, single buffered']
    #allocation8 [shape = 'u8[8192]{0}', space=vmem, size = 0x2000, scoped, tag = 'output window, operand 0']
    %10 = vsyncpa [#allocation3], 0
    %s11 = scalar_lea.sflag [#allocation3], 1
    %12 = vsyncpa %s11, 0
    %13 = vsyncpa [#allocation6], 0
    %14 = vsyncpa [#allocation4], 0
    %s15 = scalar_lea.sflag [#allocation4], 1
    %16 = vsyncpa %s15, 0
    loop: start=0, step=1, limit=4
    $region2: #{tpu_custom_call.1} parent=1 // loop_pre_header
      _
    $region3: #{tpu_custom_call.1} parent=1 // loop_header
      %s18 = sphi 0, %s22
      %p19 = scmp.ge.s32.totalorder %s18, 4
      %s28 = sphi 0, %s30
      %s31 = sphi 0, %s28
      %s32 = sphi 0, %s31
      %s48 = sphi 0, %s32
      %s52 = sphi 0, %s52
      %s54 = sphi 0, %s52
      %s55 = sphi 0, %s54
      %s69 = sphi 0, %s55
      %s73 = sphi 0, %s73
      %s75 = sphi 0, %s73
      %s76 = sphi 0, %s75
      %s90 = sphi 0, %s76
      %s94 = sphi 0, %s94
      %s96 = sphi 0, %s94
      %s97 = sphi 0, %s96
      %s111 = sphi 0, %s97
      %s117 = sphi 0, %s119
      %s120 = sphi 0, %s117
      %s121 = sphi 0, %s120
      %s137 = sphi 0, %s121
      %s143 = sphi 0, %s145
      %s146 = sphi 0, %s143
      %s147 = sphi 0, %s146
      %s163 = sphi 0, %s147
    $region4: #{tpu_custom_call.1} parent=1 // loop_header_branch
      %21 = sbr.rel (%p19) target = $region8
    $region5: #{tpu_custom_call.1} parent=1 // loop_body
      %s23 = ssub.s32 %s18, 1
      %s24 = ssub.s32 %s18, 2
      %s25 = sadd.s32 %s18, 1
      %s26 = ssub.s32 %s18, %s25
      %p27 = scmp.eq.s32.totalorder %s26, 0
      %s29 = sadd.s32 %s28, 1
      %s30 = scalar_select %p27, %s28, %s29
      %p33 = pneg %p27
      %p34 = scmp.eq.s32.totalorder %s18, 1
      %p35 = por %p33, %p34
      %p36 = scmp.ne.s32.totalorder %s28, %s31
      %p37 = scmp.eq.s32.totalorder %s18, 0
      %p38 = por %p36, %p37
      %p39 = scmp.ne.s32.totalorder %s28, %s31
      %p40 = scmp.eq.s32.totalorder %s23, 1
      %p41 = por %p39, %p40
      %p42 = scmp.ne.s32.totalorder %s31, %s32
      %p43 = scmp.eq.s32.totalorder %s23, 0
      %p44 = por %p42, %p43
      %p45 = scmp.ne.s32.totalorder %s31, %s32
      %p46 = scmp.eq.s32.totalorder %s24, 1
      %p47 = por %p45, %p46
      %p49 = scmp.ne.s32.totalorder %s32, %s48
      %p50 = scmp.eq.s32.totalorder %s24, 0
      %p51 = por %p49, %p50
      %s53 = sadd.s32 %s52, 1
      %p56 = scmp.eq.s32.totalorder %s18, 1
      %p57 = scmp.ne.s32.totalorder %s52, %s54
      %p58 = scmp.eq.s32.totalorder %s18, 0
      %p59 = por %p57, %p58
      %p60 = scmp.ne.s32.totalorder %s52, %s54
      %p61 = scmp.eq.s32.totalorder %s23, 1
      %p62 = por %p60, %p61
      %p63 = scmp.ne.s32.totalorder %s54, %s55
      %p64 = scmp.eq.s32.totalorder %s23, 0
      %p65 = por %p63, %p64
      %p66 = scmp.ne.s32.totalorder %s54, %s55
      %p67 = scmp.eq.s32.totalorder %s24, 1
      %p68 = por %p66, %p67
      %p70 = scmp.ne.s32.totalorder %s55, %s69
      %p71 = scmp.eq.s32.totalorder %s24, 0
      %p72 = por %p70, %p71
      %s74 = sadd.s32 %s73, 1
      %p77 = scmp.eq.s32.totalorder %s18, 1
      %p78 = scmp.ne.s32.totalorder %s73, %s75
      %p79 = scmp.eq.s32.totalorder %s18, 0
      %p80 = por %p78, %p79
      %p81 = scmp.ne.s32.totalorder %s73, %s75
      %p82 = scmp.eq.s32.totalorder %s23, 1
      %p83 = por %p81, %p82
      %p84 = scmp.ne.s32.totalorder %s75, %s76
      %p85 = scmp.eq.s32.totalorder %s23, 0
      %p86 = por %p84, %p85
      %p87 = scmp.ne.s32.totalorder %s75, %s76
      %p88 = scmp.eq.s32.totalorder %s24, 1
      %p89 = por %p87, %p88
      %p91 = scmp.ne.s32.totalorder %s76, %s90
      %p92 = scmp.eq.s32.totalorder %s24, 0
      %p93 = por %p91, %p92
      %s95 = sadd.s32 %s94, 1
      %p98 = scmp.eq.s32.totalorder %s18, 1
      %p99 = scmp.ne.s32.totalorder %s94, %s96
      %p100 = scmp.eq.s32.totalorder %s18, 0
      %p101 = por %p99, %p100
      %p102 = scmp.ne.s32.totalorder %s94, %s96
      %p103 = scmp.eq.s32.totalorder %s23, 1
      %p104 = por %p102, %p103
      %p105 = scmp.ne.s32.totalorder %s96, %s97
      %p106 = scmp.eq.s32.totalorder %s23, 0
      %p107 = por %p105, %p106
      %p108 = scmp.ne.s32.totalorder %s96, %s97
      %p109 = scmp.eq.s32.totalorder %s24, 1
      %p110 = por %p108, %p109
      %p112 = scmp.ne.s32.totalorder %s97, %s111
      %p113 = scmp.eq.s32.totalorder %s24, 0
      %p114 = por %p112, %p113
      %s115 = ssub.s32 %s18, %s25
      %p116 = scmp.eq.s32.totalorder %s115, 0
      %s118 = sadd.s32 %s117, 1
      %s119 = scalar_select %p116, %s117, %s118
      %p122 = pneg %p116
      %p123 = scmp.eq.s32.totalorder %s18, 1
      %p124 = por %p122, %p123
      %p125 = scmp.ne.s32.totalorder %s117, %s120
      %p126 = scmp.eq.s32.totalorder %s18, 0
      %p127 = por %p125, %p126
      %p128 = scmp.ne.s32.totalorder %s117, %s120
      %p129 = scmp.eq.s32.totalorder %s23, 1
      %p130 = por %p128, %p129
      %p131 = scmp.ne.s32.totalorder %s120, %s121
      %p132 = scmp.eq.s32.totalorder %s23, 0
      %p133 = por %p131, %p132
      %p134 = scmp.ne.s32.totalorder %s120, %s121
      %p135 = scmp.eq.s32.totalorder %s24, 1
      %p136 = por %p134, %p135
      %p138 = scmp.ne.s32.totalorder %s121, %s137
      %p139 = scmp.eq.s32.totalorder %s24, 0
      %p140 = por %p138, %p139
      %s141 = ssub.s32 %s18, %s25
      %p142 = scmp.eq.s32.totalorder %s141, 0
      %s144 = sadd.s32 %s143, 1
      %s145 = scalar_select %p142, %s143, %s144
      %p148 = pneg %p142
      %p149 = scmp.eq.s32.totalorder %s18, 1
      %p150 = por %p148, %p149
      %p151 = scmp.ne.s32.totalorder %s143, %s146
      %p152 = scmp.eq.s32.totalorder %s18, 0
      %p153 = por %p151, %p152
      %p154 = scmp.ne.s32.totalorder %s143, %s146
      %p155 = scmp.eq.s32.totalorder %s23, 1
      %p156 = por %p154, %p155
      %p157 = scmp.ne.s32.totalorder %s146, %s147
      %p158 = scmp.eq.s32.totalorder %s23, 0
      %p159 = por %p157, %p158
      %p160 = scmp.ne.s32.totalorder %s146, %s147
      %p161 = scmp.eq.s32.totalorder %s24, 1
      %p162 = por %p160, %p161
      %p164 = scmp.ne.s32.totalorder %s147, %s163
      %p165 = scmp.eq.s32.totalorder %s24, 0
      %p166 = por %p164, %p165
      %p167 = scmp.le.s32.totalorder 1, %s18
      %p168 = scmp.lt.s32.totalorder %s18, 3
      %p169 = pnand %p167, %p168
      %p170 = pneg %p169
      // Predicated region
      $region9: #{tpu_custom_call.1} parent=5 // pred_check
        _
      $region10: #{tpu_custom_call.1} parent=5 // pred_check_branch
        %172 = sbr.rel (%p169) target = $region12
      $region11: #{tpu_custom_call.1} parent=5 // pred_region
        %s173 = ssub.s32 %s18, 1
        // Predicated region
        $region13: #{tpu_custom_call.1} parent=11 // pred_check
          %p174 = pneg %p65
        $region14: #{tpu_custom_call.1} parent=11 // pred_check_branch
          %176 = sbr.rel (%p174) target = $region16
        $region15: #{tpu_custom_call.1} parent=11 // pred_region
          %s178 = ssub.s32 256, 256
          %179 = vsyncadd [#allocation6], %s178
          %s180 = sshll.u32 [#allocation5], 4
          %s181 = int_to_ptr.vmem [resolvable:$true] %s180
          %186 = dma.hbm_to_vmem [thread:$0]  %s1, 256, %s181, [#allocation6], 64, 64, 4
        $region16: #{tpu_custom_call.1} parent=11 // pred_fallthru
          _
        // Predicated region
        $region17: #{tpu_custom_call.1} parent=11 // pred_check
          %p187 = pneg %p86
        $region18: #{tpu_custom_call.1} parent=11 // pred_check_branch
          %189 = sbr.rel (%p187) target = $region20
        $region19: #{tpu_custom_call.1} parent=11 // pred_region
          %s191 = ssub.s32 384, 384
          %192 = vsyncadd [#allocation6], %s191
          %s193 = sshll.u32 [#allocation7], 4
          %s194 = int_to_ptr.vmem [resolvable:$true] %s193
          %199 = dma.hbm_to_vmem [thread:$0]  %s2, 384, %s194, [#allocation6], 64, 64, 4
        $region20: #{tpu_custom_call.1} parent=11 // pred_fallthru
          _
        // Predicated region
        $region21: #{tpu_custom_call.1} parent=11 // pred_check
          %p200 = pneg %p107
        $region22: #{tpu_custom_call.1} parent=11 // pred_check_branch
          %202 = sbr.rel (%p200) target = $region24
        $region23: #{tpu_custom_call.1} parent=11 // pred_region
          _
        $region24: #{tpu_custom_call.1} parent=11 // pred_fallthru
          _
      $region12: #{tpu_custom_call.1} parent=5 // pred_fallthru
        _
      %p203 = scmp.lt.s32.totalorder %s18, 2
      // Predicated region
      $region25: #{tpu_custom_call.1} parent=5 // pred_check
        %p204 = pneg %p203
      $region26: #{tpu_custom_call.1} parent=5 // pred_check_branch
        %206 = sbr.rel (%p204) target = $region28
      $region27: #{tpu_custom_call.1} parent=5 // pred_region
        // Predicated region
        $region29: #{tpu_custom_call.1} parent=27 // pred_check
          %p207 = pneg %p38
        $region30: #{tpu_custom_call.1} parent=27 // pred_check_branch
          %209 = sbr.rel (%p207) target = $region32
        $region31: #{tpu_custom_call.1} parent=27 // pred_region
          %s210 = sand.u32 %s28, 1
          %s211 = scalar_lea.sflag [#allocation3], %s210
          %s212 = sand.u32 %s28, 1
          %s213 = smul.addr %s212, 4
          %s214 = scalar_lea.vmem [#allocation2], %s213
          %s216 = ssub.s32 64, 64
          %217 = vsyncadd %s211, %s216
          %s218 = smul.addr %s18, 64
          %s219 = scalar_lea.hbm %s0, %s218
          %s221 = sshll.u32 %s214, 4
          %s222 = int_to_ptr.vmem [resolvable:$true] %s221
          %224 = dma.hbm_to_vmem [thread:$0]  %s219, 64, %s222, %s211
        $region32: #{tpu_custom_call.1} parent=27 // pred_fallthru
          _
        // Predicated region
        $region33: #{tpu_custom_call.1} parent=27 // pred_check
          %p225 = pneg %p127
        $region34: #{tpu_custom_call.1} parent=27 // pred_check_branch
          %227 = sbr.rel (%p225) target = $region36
        $region35: #{tpu_custom_call.1} parent=27 // pred_region
          %p228 = scmp.lt.s32.totalorder %s18, 1
          %s229 = scalar_select %p228, %s18, 1
          %s230 = scalar_lea.vmem %s4, %s229
        $region36: #{tpu_custom_call.1} parent=27 // pred_fallthru
          _
      $region28: #{tpu_custom_call.1} parent=5 // pred_fallthru
        _
      %p231 = scmp.le.s32.totalorder 1, %s18
      %p232 = scmp.lt.s32.totalorder %s18, 3
      %p233 = pnand %p231, %p232
      %p234 = pneg %p233
      // Predicated region
      $region37: #{tpu_custom_call.1} parent=5 // pred_check
        _
      $region38: #{tpu_custom_call.1} parent=5 // pred_check_branch
        %236 = sbr.rel (%p233) target = $region40
      $region39: #{tpu_custom_call.1} parent=5 // pred_region
        %s237 = ssub.s32 %s18, 1
        %s238 = sand.u32 %s31, 1
        %s239 = scalar_lea.sflag [#allocation3], %s238
        %s240 = sand.u32 %s31, 1
        %s241 = smul.addr %s240, 4
        %s242 = scalar_lea.vmem [#allocation2], %s241
        // Predicated region
        $region41: #{tpu_custom_call.1} parent=39 // pred_check
          %p243 = pneg %p44
        $region42: #{tpu_custom_call.1} parent=39 // pred_check_branch
          %245 = sbr.rel (%p243) target = $region44
        $region43: #{tpu_custom_call.1} parent=39 // pred_region
          %246 = dma.done %s239, 64
        $region44: #{tpu_custom_call.1} parent=39 // pred_fallthru
          _
        // Predicated region
        $region45: #{tpu_custom_call.1} parent=39 // pred_check
          %p247 = pneg %p65
        $region46: #{tpu_custom_call.1} parent=39 // pred_check_branch
          %249 = sbr.rel (%p247) target = $region48
        $region47: #{tpu_custom_call.1} parent=39 // pred_region
          %250 = dma.done [#allocation6], 256
        $region48: #{tpu_custom_call.1} parent=39 // pred_fallthru
          _
        // Predicated region
        $region49: #{tpu_custom_call.1} parent=39 // pred_check
          %p251 = pneg %p86
        $region50: #{tpu_custom_call.1} parent=39 // pred_check_branch
          %253 = sbr.rel (%p251) target = $region52
        $region51: #{tpu_custom_call.1} parent=39 // pred_region
          %254 = dma.done [#allocation6], 384
        $region52: #{tpu_custom_call.1} parent=39 // pred_fallthru
          _
        %s255 = sand.u32 %s31, 1
        %s256 = scalar_lea.sflag [#allocation3], %s255
        %s257 = sand.u32 %s31, 1
        %s258 = smul.addr %s257, 4
        %s259 = scalar_lea.vmem [#allocation2], %s258
        %p260 = pneg %p44
        %p261 = pneg %p41
        %p262 = pneg %p65
        %p263 = pneg %p62
        %p264 = pneg %p86
        %p265 = pneg %p83
        %p266 = pneg %p107
        %p267 = pneg %p104
        %p268 = scmp.lt.s32.totalorder %s23, 1
        %s269 = scalar_select %p268, %s23, 1
        %s270 = scalar_lea.vmem %s4, %s269
        %p271 = pneg %p133
        %p272 = pneg %p130
        %p273 = pneg %p159
        %p274 = pneg %p156
        %s275 = sand.u32 %s146, 1
        %s276 = scalar_lea.sflag [#allocation4], %s275
        %s277 = sand.u32 %s146, 1
        %s278 = smul.addr %s277, 8
        %s279 = scalar_lea.vmem [#allocation8], %s278
        %p280 = scmp.lt.s32.totalorder %s23, 1
        %s281 = scalar_select %p280, %s23, 1
        %s282 = scalar_lea.vmem %s4, %s281
        %v284 = vld [vmem:[%s242] sm:$0xf]
        %v285 = vld [vmem:[#allocation5] sm:$0xf]
        %v286 = vld [vmem:[#allocation5 + $0x4] sm:$0xf]
        %v287 = vld [vmem:[#allocation5 + $0x8] sm:$0xf]
        %v288 = vld [vmem:[#allocation5 + $0xc] sm:$0xf]
        %v293 = vunpack.c.l.b16 %v285
        %v294 = vunpack.c.l.b16 %v286
        %v295 = vunpack.c.l.b16 %v287
        %v296 = vunpack.c.l.b16 %v288
        %v297 = vpack.c.b16 %v294, %v293
        %v298 = vpack.c.b16 %v296, %v295
        %vm301 = vcmask 261120
        %v303 = vsel %vm301, %v284, 0
        %305 = vmatprep.subr.bf16.mxu0 0
        %306 = vmatpush1.bf16.msra.mxu0 %v297
        %307 = vmatprep.subr.bf16.mxu0 0
        %308 = vmatpush1.bf16.msra.mxu0 %v298
        %309 = vmatprep.subr.bf16.mxu0 0
        %310 = vmatpush1.bf16.msra.mxu0 0
        %311 = vmatprep.subr.bf16.mxu0 0
        %312 = vmatpush1.bf16.msra.mxu0 0
        %313 = vmatprep.subr.bf16.mxu0 0
        %314 = vmatpush1.bf16.msra.mxu0 0
        %315 = vmatprep.subr.bf16.mxu0 0
        %316 = vmatpush1.bf16.msra.mxu0 0
        %317 = vmatprep.subr.bf16.mxu0 0
        %318 = vmatpush1.bf16.msra.mxu0 0
        %319 = vmatprep.subr.bf16.mxu0 0
        %320 = vmatpush1.bf16.msra.mxu0 0
        %321 = vmatprep.subr.bf16.mxu0 0
        %322 = vmatpush1.bf16.msra.mxu0 0
        %323 = vmatprep.subr.bf16.mxu0 0
        %324 = vmatpush1.bf16.msra.mxu0 0
        %325 = vmatprep.subr.bf16.mxu0 0
        %326 = vmatpush1.bf16.msra.mxu0 0
        %327 = vmatprep.subr.bf16.mxu0 0
        %328 = vmatpush1.bf16.msra.mxu0 0
        %329 = vmatprep.subr.bf16.mxu0 0
        %330 = vmatpush1.bf16.msra.mxu0 0
        %331 = vmatprep.subr.bf16.mxu0 0
        %332 = vmatpush1.bf16.msra.mxu0 0
        %333 = vmatprep.subr.bf16.mxu0 0
        %334 = vmatpush1.bf16.msra.mxu0 0
        %335 = vmatprep.subr.bf16.mxu0 0
        %336 = vmatpush1.bf16.msra.mxu0 0
        %337 = vmatprep.mubr.bf16.mxu0 0
        %338 = vmatmul.mubr.bf16.gmra.mrb[0].mxu0 %v303
        %v339 = vpop.f32.mrb[0].mxu0
        %v340 = vadd.f32 0.0, %v339
        %v341 = vpop.f32.mrb[0].mxu0
        %v342 = vpop.f32.mrb[0].mxu0
        %v343 = vpop.f32.mrb[0].mxu0
        %344 = vdwg.mxu0
        %v345 = vpack.c.bf16 %v340, %v340
        %v346 = vld [vmem:[#allocation7] sm:$0xf]
        %v347 = vld [vmem:[#allocation7 + $0x4] sm:$0xf]
        %v348 = vld [vmem:[%s3] sm:$0x1]
        %v350 = vlaneseq
        %v351 = vshrl.u32 %v350, 7
        %v352 = vsub.s32 0, %v351
        %v353 = vrot.slane %v348, %v352
        %v357 = vunpack.c.l.b16 %v346
        %v358 = vunpack.c.l.b16 %v347
        %v359 = vpack.c.b16 %v358, %v357
        %vm361 = vcmask 130048
        %v363 = vsel %vm361, %v345, 0
        %365 = vmatprep.subr.bf16.mxu0 0
        %366 = vmatpush1.bf16.msra.mxu0 %v359
        %367 = vmatprep.subr.bf16.mxu0 0
        %368 = vmatpush1.bf16.msra.mxu0 0
        %369 = vmatprep.subr.bf16.mxu0 0
        %370 = vmatpush1.bf16.msra.mxu0 0
        %371 = vmatprep.subr.bf16.mxu0 0
        %372 = vmatpush1.bf16.msra.mxu0 0
        %373 = vmatprep.subr.bf16.mxu0 0
        %374 = vmatpush1.bf16.msra.mxu0 0
        %375 = vmatprep.subr.bf16.mxu0 0
        %376 = vmatpush1.bf16.msra.mxu0 0
        %377 = vmatprep.subr.bf16.mxu0 0
        %378 = vmatpush1.bf16.msra.mxu0 0
        %379 = vmatprep.subr.bf16.mxu0 0
        %380 = vmatpush1.bf16.msra.mxu0 0
        %381 = vmatprep.subr.bf16.mxu0 0
        %382 = vmatpush1.bf16.msra.mxu0 0
        %383 = vmatprep.subr.bf16.mxu0 0
        %384 = vmatpush1.bf16.msra.mxu0 0
        %385 = vmatprep.subr.bf16.mxu0 0
        %386 = vmatpush1.bf16.msra.mxu0 0
        %387 = vmatprep.subr.bf16.mxu0 0
        %388 = vmatpush1.bf16.msra.mxu0 0
        %389 = vmatprep.subr.bf16.mxu0 0
        %390 = vmatpush1.bf16.msra.mxu0 0
        %391 = vmatprep.subr.bf16.mxu0 0
        %392 = vmatpush1.bf16.msra.mxu0 0
        %393 = vmatprep.subr.bf16.mxu0 0
        %394 = vmatpush1.bf16.msra.mxu0 0
        %395 = vmatprep.subr.bf16.mxu0 0
        %396 = vmatpush1.bf16.msra.mxu0 0
        %397 = vmatprep.mubr.bf16.mxu0 0
        %398 = vmatmul.mubr.bf16.gmra.mrb[0].mxu0 %v363
        %v399 = vpop.f32.mrb[0].mxu0
        %v400 = vadd.f32 %v353, %v399
        %v401 = vpop.f32.mrb[0].mxu0
        %v402 = vpop.f32.mrb[0].mxu0
        %v403 = vpop.f32.mrb[0].mxu0
        %404 = vdwg.mxu0
        %v405 = vpack.c.bf16 %v400, %v400
        %s406 = scalar_lea.vmem [#allocation7], 8
        %v407 = vld [vmem:[%s406] sm:$0xf]
        %v408 = vld [vmem:[%s406 + $0x4] sm:$0xf]
        %s409 = scalar_lea.vmem %s3, 1
        %v410 = vld [vmem:[%s409] sm:$0x1]
        %v412 = vlaneseq
        %v413 = vshrl.u32 %v412, 7
        %v414 = vsub.s32 0, %v413
        %v415 = vrot.slane %v410, %v414
        %418 = vrot.lane.b32.xlu0 %v345, 112
        %v419 = vpop.permute.xlu0 %418
        %v422 = vunpack.c.l.b16 %v407
        %v423 = vunpack.c.l.b16 %v408
        %v424 = vpack.c.b16 %v423, %v422
        %v427 = vsel %vm361, %v419, 0
        %429 = vmatprep.subr.bf16.mxu0 0
        %430 = vmatpush1.bf16.msra.mxu0 %v424
        %431 = vmatprep.subr.bf16.mxu0 0
        %432 = vmatpush1.bf16.msra.mxu0 0
        %433 = vmatprep.subr.bf16.mxu0 0
        %434 = vmatpush1.bf16.msra.mxu0 0
        %435 = vmatprep.subr.bf16.mxu0 0
        %436 = vmatpush1.bf16.msra.mxu0 0
        %437 = vmatprep.subr.bf16.mxu0 0
        %438 = vmatpush1.bf16.msra.mxu0 0
        %439 = vmatprep.subr.bf16.mxu0 0
        %440 = vmatpush1.bf16.msra.mxu0 0
        %441 = vmatprep.subr.bf16.mxu0 0
        %442 = vmatpush1.bf16.msra.mxu0 0
        %443 = vmatprep.subr.bf16.mxu0 0
        %444 = vmatpush1.bf16.msra.mxu0 0
        %445 = vmatprep.subr.bf16.mxu0 0
        %446 = vmatpush1.bf16.msra.mxu0 0
        %447 = vmatprep.subr.bf16.mxu0 0
        %448 = vmatpush1.bf16.msra.mxu0 0
        %449 = vmatprep.subr.bf16.mxu0 0
        %450 = vmatpush1.bf16.msra.mxu0 0
        %451 = vmatprep.subr.bf16.mxu0 0
        %452 = vmatpush1.bf16.msra.mxu0 0
        %453 = vmatprep.subr.bf16.mxu0 0
        %454 = vmatpush1.bf16.msra.mxu0 0
        %455 = vmatprep.subr.bf16.mxu0 0
        %456 = vmatpush1.bf16.msra.mxu0 0
        %457 = vmatprep.subr.bf16.mxu0 0
        %458 = vmatpush1.bf16.msra.mxu0 0
        %459 = vmatprep.subr.bf16.mxu0 0
        %460 = vmatpush1.bf16.msra.mxu0 0
        %461 = vmatprep.mubr.bf16.mxu0 0
        %462 = vmatmul.mubr.bf16.gmra.mrb[0].mxu0 %v427
        %v463 = vpop.f32.mrb[0].mxu0
        %v464 = vadd.f32 %v415, %v463
        %v465 = vpop.f32.mrb[0].mxu0
        %v466 = vpop.f32.mrb[0].mxu0
        %v467 = vpop.f32.mrb[0].mxu0
        %468 = vdwg.mxu0
        %v469 = vpack.c.bf16 %v464, %v464
        %s470 = scalar_lea.vmem [#allocation7], 16
        %v471 = vld [vmem:[%s470] sm:$0xf]
        %v472 = vld [vmem:[%s470 + $0x4] sm:$0xf]
        %s473 = scalar_lea.vmem %s3, 2
        %v474 = vld [vmem:[%s473] sm:$0x1]
        %v476 = vlaneseq
        %v477 = vshrl.u32 %v476, 7
        %v478 = vsub.s32 0, %v477
        %v479 = vrot.slane %v474, %v478
        %481 = vrot.lane.b32.xlu0 %v345, 96
        %v482 = vpop.permute.xlu0 %481
        %v485 = vunpack.c.l.b16 %v471
        %v486 = vunpack.c.l.b16 %v472
        %v487 = vpack.c.b16 %v486, %v485
        %v490 = vsel %vm361, %v482, 0
        %492 = vmatprep.subr.bf16.mxu0 0
        %493 = vmatpush1.bf16.msra.mxu0 %v487
        %494 = vmatprep.subr.bf16.mxu0 0
        %495 = vmatpush1.bf16.msra.mxu0 0
        %496 = vmatprep.subr.bf16.mxu0 0
        %497 = vmatpush1.bf16.msra.mxu0 0
        %498 = vmatprep.subr.bf16.mxu0 0
        %499 = vmatpush1.bf16.msra.mxu0 0
        %500 = vmatprep.subr.bf16.mxu0 0
        %501 = vmatpush1.bf16.msra.mxu0 0
        %502 = vmatprep.subr.bf16.mxu0 0
        %503 = vmatpush1.bf16.msra.mxu0 0
        %504 = vmatprep.subr.bf16.mxu0 0
        %505 = vmatpush1.bf16.msra.mxu0 0
        %506 = vmatprep.subr.bf16.mxu0 0
        %507 = vmatpush1.bf16.msra.mxu0 0
        %508 = vmatprep.subr.bf16.mxu0 0
        %509 = vmatpush1.bf16.msra.mxu0 0
        %510 = vmatprep.subr.bf16.mxu0 0
        %511 = vmatpush1.bf16.msra.mxu0 0
        %512 = vmatprep.subr.bf16.mxu0 0
        %513 = vmatpush1.bf16.msra.mxu0 0
        %514 = vmatprep.subr.bf16.mxu0 0
        %515 = vmatpush1.bf16.msra.mxu0 0
        %516 = vmatprep.subr.bf16.mxu0 0
        %517 = vmatpush1.bf16.msra.mxu0 0
        %518 = vmatprep.subr.bf16.mxu0 0
        %519 = vmatpush1.bf16.msra.mxu0 0
        %520 = vmatprep.subr.bf16.mxu0 0
        %521 = vmatpush1.bf16.msra.mxu0 0
        %522 = vmatprep.subr.bf16.mxu0 0
        %523 = vmatpush1.bf16.msra.mxu0 0
        %524 = vmatprep.mubr.bf16.mxu0 0
        %525 = vmatmul.mubr.bf16.gmra.mrb[0].mxu0 %v490
        %v526 = vpop.f32.mrb[0].mxu0
        %v527 = vadd.f32 %v479, %v526
        %v528 = vpop.f32.mrb[0].mxu0
        %v529 = vpop.f32.mrb[0].mxu0
        %v530 = vpop.f32.mrb[0].mxu0
        %531 = vdwg.mxu0
        %v532 = vpack.c.bf16 %v527, %v527
        %534 = vrot.lane.b32.xlu0 %v405, 120
        %v535 = vpop.permute.xlu0 %534
        %536 = vrot.lane.b32.xlu0 %v405, 112
        %v537 = vpop.permute.xlu0 %536
        %538 = vrot.lane.b32.xlu0 %v405, 104
        %v539 = vpop.permute.xlu0 %538
        %541 = vrot.lane.b32.xlu0 %v469, 120
        %v542 = vpop.permute.xlu0 %541
        %543 = vrot.lane.b32.xlu0 %v469, 112
        %v544 = vpop.permute.xlu0 %543
        %545 = vrot.lane.b32.xlu0 %v469, 104
        %v546 = vpop.permute.xlu0 %545
        %548 = vrot.lane.b32.xlu0 %v532, 120
        %v549 = vpop.permute.xlu0 %548
        %550 = vrot.lane.b32.xlu0 %v532, 112
        %v551 = vpop.permute.xlu0 %550
        %552 = vrot.lane.b32.xlu0 %v532, 104
        %v553 = vpop.permute.xlu0 %552
        %v554 = vld [vmem:[%s282] sm:$0x1]
        %v556 = vlaneseq
        %v557 = vshrl.u32 %v556, 7
        %v558 = vsub.s32 0, %v557
        %v559 = vrot.slane %v554, %v558
        %vm561 = vcmask 64512
        %v563 = vsel %vm561, %v405, 0
        %v566 = vsel %vm561, %v469, 0
        %568 = vmatprep.subr.bf16.mxu0 0
        %569 = vmatpush1.bf16.xpose.msra.mxu0 %v566
        %570 = vmatprep.subr.bf16.mxu0 0
        %571 = vmatpush1.bf16.xpose.msra.mxu0 0
        %572 = vmatprep.subr.bf16.mxu0 0
        %573 = vmatpush1.bf16.xpose.msra.mxu0 0
        %574 = vmatprep.subr.bf16.mxu0 0
        %575 = vmatpush1.bf16.xpose.msra.mxu0 0
        %576 = vmatprep.subr.bf16.mxu0 0
        %577 = vmatpush1.bf16.xpose.msra.mxu0 0
        %578 = vmatprep.subr.bf16.mxu0 0
        %579 = vmatpush1.bf16.xpose.msra.mxu0 0
        %580 = vmatprep.subr.bf16.mxu0 0
        %581 = vmatpush1.bf16.xpose.msra.mxu0 0
        %582 = vmatprep.subr.bf16.mxu0 0
        %583 = vmatpush1.bf16.xpose.msra.mxu0 0
        %584 = vmatprep.subr.bf16.mxu0 0
        %585 = vmatpush1.bf16.xpose.msra.mxu0 0
        %586 = vmatprep.subr.bf16.mxu0 0
        %587 = vmatpush1.bf16.xpose.msra.mxu0 0
        %588 = vmatprep.subr.bf16.mxu0 0
        %589 = vmatpush1.bf16.xpose.msra.mxu0 0
        %590 = vmatprep.subr.bf16.mxu0 0
        %591 = vmatpush1.bf16.xpose.msra.mxu0 0
        %592 = vmatprep.subr.bf16.mxu0 0
        %593 = vmatpush1.bf16.xpose.msra.mxu0 0
        %594 = vmatprep.subr.bf16.mxu0 0
        %595 = vmatpush1.bf16.xpose.msra.mxu0 0
        %596 = vmatprep.subr.bf16.mxu0 0
        %597 = vmatpush1.bf16.xpose.msra.mxu0 0
        %598 = vmatprep.subr.bf16.mxu0 0
        %599 = vmatpush1.bf16.xpose.msra.mxu0 0
        %600 = vmatprep.mubr.bf16.mxu0 0
        %601 = vmatmul.mubr.bf16.gmra.mrb[0].mxu0 %v563
        %v602 = vpop.f32.mrb[0].mxu0
        %v603 = vadd.f32 %v559, %v602
        %v604 = vpop.f32.mrb[0].mxu0
        %v605 = vpop.f32.mrb[0].mxu0
        %v606 = vpop.f32.mrb[0].mxu0
        %607 = vdwg.mxu0
        %v609 = vsel %vm561, %v535, 0
        %v612 = vsel %vm561, %v542, 0
        %614 = vmatprep.subr.bf16.mxu0 0
        %615 = vmatpush1.bf16.xpose.msra.mxu0 %v612
        %616 = vmatprep.subr.bf16.mxu0 0
        %617 = vmatpush1.bf16.xpose.msra.mxu0 0
        %618 = vmatprep.subr.bf16.mxu0 0
        %619 = vmatpush1.bf16.xpose.msra.mxu0 0
        %620 = vmatprep.subr.bf16.mxu0 0
        %621 = vmatpush1.bf16.xpose.msra.mxu0 0
        %622 = vmatprep.subr.bf16.mxu0 0
        %623 = vmatpush1.bf16.xpose.msra.mxu0 0
        %624 = vmatprep.subr.bf16.mxu0 0
        %625 = vmatpush1.bf16.xpose.msra.mxu0 0
        %626 = vmatprep.subr.bf16.mxu0 0
        %627 = vmatpush1.bf16.xpose.msra.mxu0 0
        %628 = vmatprep.subr.bf16.mxu0 0
        %629 = vmatpush1.bf16.xpose.msra.mxu0 0
        %630 = vmatprep.subr.bf16.mxu0 0
        %631 = vmatpush1.bf16.xpose.msra.mxu0 0
        %632 = vmatprep.subr.bf16.mxu0 0
        %633 = vmatpush1.bf16.xpose.msra.mxu0 0
        %634 = vmatprep.subr.bf16.mxu0 0
        %635 = vmatpush1.bf16.xpose.msra.mxu0 0
        %636 = vmatprep.subr.bf16.mxu0 0
        %637 = vmatpush1.bf16.xpose.msra.mxu0 0
        %638 = vmatprep.subr.bf16.mxu0 0
        %639 = vmatpush1.bf16.xpose.msra.mxu0 0
        %640 = vmatprep.subr.bf16.mxu0 0
        %641 = vmatpush1.bf16.xpose.msra.mxu0 0
        %642 = vmatprep.subr.bf16.mxu0 0
        %643 = vmatpush1.bf16.xpose.msra.mxu0 0
        %644 = vmatprep.subr.bf16.mxu0 0
        %645 = vmatpush1.bf16.xpose.msra.mxu0 0
        %646 = vmatprep.mubr.bf16.mxu0 0
        %647 = vmatmul.mubr.bf16.gmra.mrb[0].mxu0 %v609
        %v648 = vpop.f32.mrb[0].mxu0
        %v649 = vadd.f32 %v559, %v648
        %v650 = vpop.f32.mrb[0].mxu0
        %v651 = vpop.f32.mrb[0].mxu0
        %v652 = vpop.f32.mrb[0].mxu0
        %653 = vdwg.mxu0
        %v655 = vsel %vm561, %v537, 0
        %v658 = vsel %vm561, %v544, 0
        %660 = vmatprep.subr.bf16.mxu0 0
        %661 = vmatpush1.bf16.xpose.msra.mxu0 %v658
        %662 = vmatprep.subr.bf16.mxu0 0
        %663 = vmatpush1.bf16.xpose.msra.mxu0 0
        %664 = vmatprep.subr.bf16.mxu0 0
        %665 = vmatpush1.bf16.xpose.msra.mxu0 0
        %666 = vmatprep.subr.bf16.mxu0 0
        %667 = vmatpush1.bf16.xpose.msra.mxu0 0
        %668 = vmatprep.subr.bf16.mxu0 0
        %669 = vmatpush1.bf16.xpose.msra.mxu0 0
        %670 = vmatprep.subr.bf16.mxu0 0
        %671 = vmatpush1.bf16.xpose.msra.mxu0 0
        %672 = vmatprep.subr.bf16.mxu0 0
        %673 = vmatpush1.bf16.xpose.msra.mxu0 0
        %674 = vmatprep.subr.bf16.mxu0 0
        %675 = vmatpush1.bf16.xpose.msra.mxu0 0
        %676 = vmatprep.subr.bf16.mxu0 0
        %677 = vmatpush1.bf16.xpose.msra.mxu0 0
        %678 = vmatprep.subr.bf16.mxu0 0
        %679 = vmatpush1.bf16.xpose.msra.mxu0 0
        %680 = vmatprep.subr.bf16.mxu0 0
        %681 = vmatpush1.bf16.xpose.msra.mxu0 0
        %682 = vmatprep.subr.bf16.mxu0 0
        %683 = vmatpush1.bf16.xpose.msra.mxu0 0
        %684 = vmatprep.subr.bf16.mxu0 0
        %685 = vmatpush1.bf16.xpose.msra.mxu0 0
        %686 = vmatprep.subr.bf16.mxu0 0
        %687 = vmatpush1.bf16.xpose.msra.mxu0 0
        %688 = vmatprep.subr.bf16.mxu0 0
        %689 = vmatpush1.bf16.xpose.msra.mxu0 0
        %690 = vmatprep.subr.bf16.mxu0 0
        %691 = vmatpush1.bf16.xpose.msra.mxu0 0
        %692 = vmatprep.mubr.bf16.mxu0 0
        %693 = vmatmul.mubr.bf16.gmra.mrb[0].mxu0 %v655
        %v694 = vpop.f32.mrb[0].mxu0
        %v695 = vadd.f32 %v559, %v694
        %v696 = vpop.f32.mrb[0].mxu0
        %v697 = vpop.f32.mrb[0].mxu0
        %v698 = vpop.f32.mrb[0].mxu0
        %699 = vdwg.mxu0
        %v701 = vsel %vm561, %v539, 0
        %v704 = vsel %vm561, %v546, 0
        %706 = vmatprep.subr.bf16.mxu0 0
        %707 = vmatpush1.bf16.xpose.msra.mxu0 %v704
        %708 = vmatprep.subr.bf16.mxu0 0
        %709 = vmatpush1.bf16.xpose.msra.mxu0 0
        %710 = vmatprep.subr.bf16.mxu0 0
        %711 = vmatpush1.bf16.xpose.msra.mxu0 0
        %712 = vmatprep.subr.bf16.mxu0 0
        %713 = vmatpush1.bf16.xpose.msra.mxu0 0
        %714 = vmatprep.subr.bf16.mxu0 0
        %715 = vmatpush1.bf16.xpose.msra.mxu0 0
        %716 = vmatprep.subr.bf16.mxu0 0
        %717 = vmatpush1.bf16.xpose.msra.mxu0 0
        %718 = vmatprep.subr.bf16.mxu0 0
        %719 = vmatpush1.bf16.xpose.msra.mxu0 0
        %720 = vmatprep.subr.bf16.mxu0 0
        %721 = vmatpush1.bf16.xpose.msra.mxu0 0
        %722 = vmatprep.subr.bf16.mxu0 0
        %723 = vmatpush1.bf16.xpose.msra.mxu0 0
        %724 = vmatprep.subr.bf16.mxu0 0
        %725 = vmatpush1.bf16.xpose.msra.mxu0 0
        %726 = vmatprep.subr.bf16.mxu0 0
        %727 = vmatpush1.bf16.xpose.msra.mxu0 0
        %728 = vmatprep.subr.bf16.mxu0 0
        %729 = vmatpush1.bf16.xpose.msra.mxu0 0
        %730 = vmatprep.subr.bf16.mxu0 0
        %731 = vmatpush1.bf16.xpose.msra.mxu0 0
        %732 = vmatprep.subr.bf16.mxu0 0
        %733 = vmatpush1.bf16.xpose.msra.mxu0 0
        %734 = vmatprep.subr.bf16.mxu0 0
        %735 = vmatpush1.bf16.xpose.msra.mxu0 0
        %736 = vmatprep.subr.bf16.mxu0 0
        %737 = vmatpush1.bf16.xpose.msra.mxu0 0
        %738 = vmatprep.mubr.bf16.mxu0 0
        %739 = vmatmul.mubr.bf16.gmra.mrb[0].mxu0 %v701
        %v740 = vpop.f32.mrb[0].mxu0
        %v741 = vadd.f32 %v559, %v740
        %v742 = vpop.f32.mrb[0].mxu0
        %v743 = vpop.f32.mrb[0].mxu0
        %v744 = vpop.f32.mrb[0].mxu0
        %745 = vdwg.mxu0
        %v746 = vsel %vm561, %v603, -inf
        %747 = vmax.xlane.f32.xlu0 %v746
        %v748 = vpop.xlane.xlu0 %747
        %v749 = vsel %vm561, %v649, -inf
        %750 = vmax.xlane.f32.xlu0 %v749
        %v751 = vpop.xlane.xlu0 %750
        %v752 = vsel %vm561, %v695, -inf
        %753 = vmax.xlane.f32.xlu0 %v752
        %v754 = vpop.xlane.xlu0 %753
        %v755 = vsel %vm561, %v741, -inf
        %756 = vmax.xlane.f32.xlu0 %v755
        %v757 = vpop.xlane.xlu0 %756
        %v758 = vsub.f32 %v603, %v748
        %v759 = vsub.f32 %v649, %v751
        %v760 = vsub.f32 %v695, %v754
        %v761 = vsub.f32 %v741, %v757
        %v762 = vmul.f32 %v758, 1.442695
        %v763 = vpow.pop %v762
        %v764 = vmul.f32 %v759, 1.442695
        %v765 = vpow.pop %v764
        %v766 = vmul.f32 %v760, 1.442695
        %v767 = vpow.pop %v766
        %v768 = vmul.f32 %v761, 1.442695
        %v769 = vpow.pop %v768
        %v770 = vsel %vm561, %v763, 0.0
        %771 = vadd.xlane.f32.xlu0 %v770
        %v772 = vpop.xlane.xlu0 %771
        %v773 = vsel %vm561, %v765, 0.0
        %774 = vadd.xlane.f32.xlu0 %v773
        %v775 = vpop.xlane.xlu0 %774
        %v776 = vsel %vm561, %v767, 0.0
        %777 = vadd.xlane.f32.xlu0 %v776
        %v778 = vpop.xlane.xlu0 %777
        %v779 = vsel %vm561, %v769, 0.0
        %780 = vadd.xlane.f32.xlu0 %v779
        %v781 = vpop.xlane.xlu0 %780
        %v782 = vrcp.pop %v772
        %v783 = vrcp.pop %v775
        %v784 = vrcp.pop %v778
        %v785 = vrcp.pop %v781
        %v786 = vmul.f32 %v763, %v782
        %v787 = vmul.f32 %v765, %v783
        %v788 = vmul.f32 %v767, %v784
        %v789 = vmul.f32 %v769, %v785
        %v790 = vpack.c.bf16 %v786, %v786
        %v791 = vpack.c.bf16 %v787, %v787
        %v792 = vpack.c.bf16 %v788, %v788
        %v793 = vpack.c.bf16 %v789, %v789
        %v795 = vsel %vm561, %v790, 0
        %vm797 = vcmask 1043456
        %v799 = vsel %vm797, %v532, 0
        %801 = vmatprep.subr.bf16.mxu0 0
        %802 = vmatpush1.bf16.msra.mxu0 %v799
        %803 = vmatprep.subr.bf16.mxu0 0
        %804 = vmatpush1.bf16.msra.mxu0 0
        %805 = vmatprep.subr.bf16.mxu0 0
        %806 = vmatpush1.bf16.msra.mxu0 0
        %807 = vmatprep.subr.bf16.mxu0 0
        %808 = vmatpush1.bf16.msra.mxu0 0
        %809 = vmatprep.subr.bf16.mxu0 0
        %810 = vmatpush1.bf16.msra.mxu0 0
        %811 = vmatprep.subr.bf16.mxu0 0
        %812 = vmatpush1.bf16.msra.mxu0 0
        %813 = vmatprep.subr.bf16.mxu0 0
        %814 = vmatpush1.bf16.msra.mxu0 0
        %815 = vmatprep.subr.bf16.mxu0 0
        %816 = vmatpush1.bf16.msra.mxu0 0
        %817 = vmatprep.subr.bf16.mxu0 0
        %818 = vmatpush1.bf16.msra.mxu0 0
        %819 = vmatprep.subr.bf16.mxu0 0
        %820 = vmatpush1.bf16.msra.mxu0 0
        %821 = vmatprep.subr.bf16.mxu0 0
        %822 = vmatpush1.bf16.msra.mxu0 0
        %823 = vmatprep.subr.bf16.mxu0 0
        %824 = vmatpush1.bf16.msra.mxu0 0
        %825 = vmatprep.subr.bf16.mxu0 0
        %826 = vmatpush1.bf16.msra.mxu0 0
        %827 = vmatprep.subr.bf16.mxu0 0
        %828 = vmatpush1.bf16.msra.mxu0 0
        %829 = vmatprep.subr.bf16.mxu0 0
        %830 = vmatpush1.bf16.msra.mxu0 0
        %831 = vmatprep.subr.bf16.mxu0 0
        %832 = vmatpush1.bf16.msra.mxu0 0
        %833 = vmatprep.mubr.bf16.mxu0 0
        %834 = vmatmul.mubr.bf16.gmra.mrb[0].mxu0 %v795
        %v835 = vpop.f32.mrb[0].mxu0
        %v836 = vadd.f32 0.0, %v835
        %v837 = vpop.f32.mrb[0].mxu0
        %v838 = vpop.f32.mrb[0].mxu0
        %v839 = vpop.f32.mrb[0].mxu0
        %840 = vdwg.mxu0
        %v842 = vsel %vm561, %v791, 0
        %v845 = vsel %vm797, %v549, 0
        %847 = vmatprep.subr.bf16.mxu0 0
        %848 = vmatpush1.bf16.msra.mxu0 %v845
        %849 = vmatprep.subr.bf16.mxu0 0
        %850 = vmatpush1.bf16.msra.mxu0 0
        %851 = vmatprep.subr.bf16.mxu0 0
        %852 = vmatpush1.bf16.msra.mxu0 0
        %853 = vmatprep.subr.bf16.mxu0 0
        %854 = vmatpush1.bf16.msra.mxu0 0
        %855 = vmatprep.subr.bf16.mxu0 0
        %856 = vmatpush1.bf16.msra.mxu0 0
        %857 = vmatprep.subr.bf16.mxu0 0
        %858 = vmatpush1.bf16.msra.mxu0 0
        %859 = vmatprep.subr.bf16.mxu0 0
        %860 = vmatpush1.bf16.msra.mxu0 0
        %861 = vmatprep.subr.bf16.mxu0 0
        %862 = vmatpush1.bf16.msra.mxu0 0
        %863 = vmatprep.subr.bf16.mxu0 0
        %864 = vmatpush1.bf16.msra.mxu0 0
        %865 = vmatprep.subr.bf16.mxu0 0
        %866 = vmatpush1.bf16.msra.mxu0 0
        %867 = vmatprep.subr.bf16.mxu0 0
        %868 = vmatpush1.bf16.msra.mxu0 0
        %869 = vmatprep.subr.bf16.mxu0 0
        %870 = vmatpush1.bf16.msra.mxu0 0
        %871 = vmatprep.subr.bf16.mxu0 0
        %872 = vmatpush1.bf16.msra.mxu0 0
        %873 = vmatprep.subr.bf16.mxu0 0
        %874 = vmatpush1.bf16.msra.mxu0 0
        %875 = vmatprep.subr.bf16.mxu0 0
        %876 = vmatpush1.bf16.msra.mxu0 0
        %877 = vmatprep.subr.bf16.mxu0 0
        %878 = vmatpush1.bf16.msra.mxu0 0
        %879 = vmatprep.mubr.bf16.mxu0 0
        %880 = vmatmul.mubr.bf16.gmra.mrb[0].mxu0 %v842
        %v881 = vpop.f32.mrb[0].mxu0
        %v882 = vadd.f32 0.0, %v881
        %v883 = vpop.f32.mrb[0].mxu0
        %v884 = vpop.f32.mrb[0].mxu0
        %v885 = vpop.f32.mrb[0].mxu0
        %886 = vdwg.mxu0
        %v888 = vsel %vm561, %v792, 0
        %v891 = vsel %vm797, %v551, 0
        %893 = vmatprep.subr.bf16.mxu0 0
        %894 = vmatpush1.bf16.msra.mxu0 %v891
        %895 = vmatprep.subr.bf16.mxu0 0
        %896 = vmatpush1.bf16.msra.mxu0 0
        %897 = vmatprep.subr.bf16.mxu0 0
        %898 = vmatpush1.bf16.msra.mxu0 0
        %899 = vmatprep.subr.bf16.mxu0 0
        %900 = vmatpush1.bf16.msra.mxu0 0
        %901 = vmatprep.subr.bf16.mxu0 0
        %902 = vmatpush1.bf16.msra.mxu0 0
        %903 = vmatprep.subr.bf16.mxu0 0
        %904 = vmatpush1.bf16.msra.mxu0 0
        %905 = vmatprep.subr.bf16.mxu0 0
        %906 = vmatpush1.bf16.msra.mxu0 0
        %907 = vmatprep.subr.bf16.mxu0 0
        %908 = vmatpush1.bf16.msra.mxu0 0
        %909 = vmatprep.subr.bf16.mxu0 0
        %910 = vmatpush1.bf16.msra.mxu0 0
        %911 = vmatprep.subr.bf16.mxu0 0
        %912 = vmatpush1.bf16.msra.mxu0 0
        %913 = vmatprep.subr.bf16.mxu0 0
        %914 = vmatpush1.bf16.msra.mxu0 0
        %915 = vmatprep.subr.bf16.mxu0 0
        %916 = vmatpush1.bf16.msra.mxu0 0
        %917 = vmatprep.subr.bf16.mxu0 0
        %918 = vmatpush1.bf16.msra.mxu0 0
        %919 = vmatprep.subr.bf16.mxu0 0
        %920 = vmatpush1.bf16.msra.mxu0 0
        %921 = vmatprep.subr.bf16.mxu0 0
        %922 = vmatpush1.bf16.msra.mxu0 0
        %923 = vmatprep.subr.bf16.mxu0 0
        %924 = vmatpush1.bf16.msra.mxu0 0
        %925 = vmatprep.mubr.bf16.mxu0 0
        %926 = vmatmul.mubr.bf16.gmra.mrb[0].mxu0 %v888
        %v927 = vpop.f32.mrb[0].mxu0
        %v928 = vadd.f32 0.0, %v927
        %v929 = vpop.f32.mrb[0].mxu0
        %v930 = vpop.f32.mrb[0].mxu0
        %v931 = vpop.f32.mrb[0].mxu0
        %932 = vdwg.mxu0
        %v934 = vsel %vm561, %v793, 0
        %v937 = vsel %vm797, %v553, 0
        %939 = vmatprep.subr.bf16.mxu0 0
        %940 = vmatpush1.bf16.msra.mxu0 %v937
        %941 = vmatprep.subr.bf16.mxu0 0
        %942 = vmatpush1.bf16.msra.mxu0 0
        %943 = vmatprep.subr.bf16.mxu0 0
        %944 = vmatpush1.bf16.msra.mxu0 0
        %945 = vmatprep.subr.bf16.mxu0 0
        %946 = vmatpush1.bf16.msra.mxu0 0
        %947 = vmatprep.subr.bf16.mxu0 0
        %948 = vmatpush1.bf16.msra.mxu0 0
        %949 = vmatprep.subr.bf16.mxu0 0
        %950 = vmatpush1.bf16.msra.mxu0 0
        %951 = vmatprep.subr.bf16.mxu0 0
        %952 = vmatpush1.bf16.msra.mxu0 0
        %953 = vmatprep.subr.bf16.mxu0 0
        %954 = vmatpush1.bf16.msra.mxu0 0
        %955 = vmatprep.subr.bf16.mxu0 0
        %956 = vmatpush1.bf16.msra.mxu0 0
        %957 = vmatprep.subr.bf16.mxu0 0
        %958 = vmatpush1.bf16.msra.mxu0 0
        %959 = vmatprep.subr.bf16.mxu0 0
        %960 = vmatpush1.bf16.msra.mxu0 0
        %961 = vmatprep.subr.bf16.mxu0 0
        %962 = vmatpush1.bf16.msra.mxu0 0
        %963 = vmatprep.subr.bf16.mxu0 0
        %964 = vmatpush1.bf16.msra.mxu0 0
        %965 = vmatprep.subr.bf16.mxu0 0
        %966 = vmatpush1.bf16.msra.mxu0 0
        %967 = vmatprep.subr.bf16.mxu0 0
        %968 = vmatpush1.bf16.msra.mxu0 0
        %969 = vmatprep.subr.bf16.mxu0 0
        %970 = vmatpush1.bf16.msra.mxu0 0
        %971 = vmatprep.mubr.bf16.mxu0 0
        %972 = vmatmul.mubr.bf16.gmra.mrb[0].mxu0 %v934
        %v973 = vpop.f32.mrb[0].mxu0
        %v974 = vadd.f32 0.0, %v973
        %v975 = vpop.f32.mrb[0].mxu0
        %v976 = vpop.f32.mrb[0].mxu0
        %v977 = vpop.f32.mrb[0].mxu0
        %978 = vdwg.mxu0
        %980 = vrot.lane.b32.xlu0 %v882, 8
        %v981 = vpop.permute.xlu0 %980
        %984 = vrot.lane.b32.xlu0 %v928, 16
        %v985 = vpop.permute.xlu0 %984
        %988 = vrot.lane.b32.xlu0 %v974, 24
        %v989 = vpop.permute.xlu0 %988
        %v991 = vsel %vm561, %v836, %v981
        %v992 = vsel %vm361, %v991, %v985
        %vm993 = vcmask 195584
        %v994 = vsel %vm993, %v992, %v989
        %995 = vst.msk [vmem:[%s279] sm:$0xff] %vm301, %v994
        %s996 = sand.u32 %s146, 1
        %s997 = scalar_lea.sflag [#allocation4], %s996
        %s998 = sand.u32 %s146, 1
        %s999 = smul.addr %s998, 8
        %s1000 = scalar_lea.vmem [#allocation8], %s999
        // Predicated region
        $region53: #{tpu_custom_call.1} parent=39 // pred_check
          %p1001 = pneg %p156
        $region54: #{tpu_custom_call.1} parent=39 // pred_check_branch
          %1003 = sbr.rel (%p1001) target = $region56
        $region55: #{tpu_custom_call.1} parent=39 // pred_region
          %s1005 = ssub.s32 128, 128
          %1006 = vsyncadd %s997, %s1005
          %s1007 = smul.addr %s23, 128
          %s1008 = scalar_lea.hbm %s5, %s1007
          %s1010 = sshll.u32 %s1000, 4
          %s1011 = int_to_ptr.vmem [resolvable:$true] %s1010
          %1013 = dma.vmem_to_hbm [thread:$0]  %s1011, 128, %s1008, %s997
        $region56: #{tpu_custom_call.1} parent=39 // pred_fallthru
          _
      $region40: #{tpu_custom_call.1} parent=5 // pred_fallthru
        _
      %p1014 = scmp.le.s32.totalorder 2, %s18
      // Predicated region
      $region57: #{tpu_custom_call.1} parent=5 // pred_check
        %p1015 = pneg %p1014
      $region58: #{tpu_custom_call.1} parent=5 // pred_check_branch
        %1017 = sbr.rel (%p1015) target = $region60
      $region59: #{tpu_custom_call.1} parent=5 // pred_region
        %s1018 = ssub.s32 %s18, 2
        // Predicated region
        $region61: #{tpu_custom_call.1} parent=59 // pred_check
          %p1019 = pneg %p162
        $region62: #{tpu_custom_call.1} parent=59 // pred_check_branch
          %1021 = sbr.rel (%p1019) target = $region64
        $region63: #{tpu_custom_call.1} parent=59 // pred_region
          %s1022 = sand.u32 %s147, 1
          %s1023 = scalar_lea.sflag [#allocation4], %s1022
          %s1024 = sand.u32 %s147, 1
          %s1025 = smul.addr %s1024, 8
          %s1026 = scalar_lea.vmem [#allocation8], %s1025
          %1027 = dma.done %s1023, 128
        $region64: #{tpu_custom_call.1} parent=59 // pred_fallthru
          _
      $region60: #{tpu_custom_call.1} parent=5 // pred_fallthru
        _
    $region6: #{tpu_custom_call.1} parent=1 // loop_footer
      %s22 = sadd.s32 1, %s18
    $region7: #{tpu_custom_call.1} parent=1 // loop_footer_branch
      %17 = sbr.rel target = $region3
    $region8: #{tpu_custom_call.1} parent=1 // loop_exit
      _
    %1028 = vsyncpa [#allocation3], 1
    %s1029 = scalar_lea.sflag [#allocation3], 1
    %1030 = vsyncpa %s1029, 1
    %1031 = vsyncpa [#allocation6], 1
    %1032 = vsyncpa [#allocation4], 1
    %s1033 = scalar_lea.sflag [#allocation4], 1
    %1034 = vsyncpa %s1033, 1

</llo_original>
